<compile_context>
chip_gen: v7x
topology: tpu7x:2x2x1
jax: 0.10.0
libtpu: 0.0.40
codegen_flags: <defaults>
</compile_context>

<pallas_src>
import functools

import jax
import jax.numpy as jnp
from jax.experimental import pallas as pl
from jax.experimental.pallas import tpu as pltpu


ACTION_SCALE = 1.0   # action_space is None in this synthetic setup
ACTION_BIAS = 0.0


def _round_up(x, m):
    return ((x + m - 1) // m) * m


def _make_policy_kernel(action_scale, action_bias):
    """Build the kernel; the affine is only emitted when non-trivial."""

    def policy_kernel(x_ref, w0_ref, b0_ref, w1_ref, b1_ref, w2_ref, b2_ref,
                      out_ref):
        # Layer 0: Linear (bf16 operands, f32 MXU accumulation) + bias + ReLU.
        x = x_ref[...].astype(jnp.bfloat16)
        h0 = jnp.dot(x, w0_ref[...], preferred_element_type=jnp.float32)
        h0 = jnp.maximum(h0 + b0_ref[...], 0.0)
        # Layer 1: Linear + ReLU.
        h1 = jnp.dot(h0.astype(jnp.bfloat16), w1_ref[...],
                     preferred_element_type=jnp.float32)
        h1 = jnp.maximum(h1 + b1_ref[...], 0.0)
        # Output layer: Linear + tanh squash (f32 epilogue).
        y = jnp.dot(h1.astype(jnp.bfloat16), w2_ref[...],
                    preferred_element_type=jnp.float32)
        y = jnp.tanh(y + b2_ref[...])
        # Affine action transform — skipped entirely when identity.
        if action_scale != 1.0:
            y = y * action_scale
        if action_bias != 0.0:
            y = y + action_bias
        out_ref[...] = y

    return policy_kernel


def prepare_params(params):
    """One-time weight prep (call OUTSIDE the jitted forward).

    Hidden dims are zero-padded to multiples of 128 (exact: ReLU(0)=0 and zero
    weight rows/cols contribute nothing) and weights are cast to bf16 for
    native-rate MXU matmuls.  The input feature dim and the action (output)
    dim are kept at their true sizes so the state/output HBM traffic stays
    narrow.
    """
    w0, b0 = params["w0"], params["b0"]
    w1, b1 = params["w1"], params["b1"]
    w2, b2 = params["w2"], params["b2"]
    d_in, h0 = w0.shape
    _, h1 = w1.shape
    _, n_act = w2.shape
    h0_p = _round_up(h0, 128)
    h1_p = _round_up(h1, 128)

    def pad2(a, rows, cols):
        return jnp.pad(a, ((0, rows - a.shape[0]), (0, cols - a.shape[1])))

    return {
        "w0": pad2(w0, d_in, h0_p).astype(jnp.bfloat16),
        "b0": pad2(b0, 1, h0_p).astype(jnp.float32),
        "w1": pad2(w1, h0_p, h1_p).astype(jnp.bfloat16),
        "b1": pad2(b1, 1, h1_p).astype(jnp.float32),
        "w2": pad2(w2, h1_p, n_act).astype(jnp.bfloat16),
        "b2": b2.astype(jnp.float32),
    }


@functools.partial(jax.jit, static_argnames=("tb",))
def deterministic_policy_forward(state, prepped, *, tb=None):
    """state: [B, num_inputs] f32; prepped: output of prepare_params."""
    w0, b0 = prepped["w0"], prepped["b0"]
    w1, b1 = prepped["w1"], prepped["b1"]
    w2, b2 = prepped["w2"], prepped["b2"]
    B, d_in = state.shape
    h0_p = w0.shape[1]
    h1_p = w1.shape[1]
    n_act = w2.shape[1]

    # Batch tile: multiple of 8 sublanes, up to 512 rows.  Large tiles
    # amortize per-step overhead; for B > 512 the grid is >= 2 deep so both
    # v7x TensorCores get work via the "parallel" batch axis.
    if tb is None:
        tb = min(_round_up(B, 8), 512)
    grid = pl.cdiv(B, tb)   # partial last block is masked by Pallas

    # Weights/biases: constant block index -> loaded once, VMEM-resident.
    def resident(shape):
        return pl.BlockSpec(shape, lambda i: (0, 0))

    flops = 2 * B * (d_in * h0_p + h0_p * h1_p + h1_p * n_act)
    weight_bytes = sum(int(v.size) * v.dtype.itemsize for v in prepped.values())
    bytes_accessed = (B * d_in * state.dtype.itemsize   # state read
                      + weight_bytes                    # weights/biases
                      + B * n_act * 4)                  # output write

    out = pl.pallas_call(
        _make_policy_kernel(ACTION_SCALE, ACTION_BIAS),
        out_shape=jax.ShapeDtypeStruct((B, n_act), jnp.float32),
        grid_spec=pltpu.PrefetchScalarGridSpec(
            num_scalar_prefetch=0,
            grid=(grid,),
            in_specs=[
                # state tile: true feature width (block last dim == array dim)
                pl.BlockSpec((tb, d_in), lambda i: (i, 0)),
                resident(w0.shape), resident(b0.shape),
                resident(w1.shape), resident(b1.shape),
                resident(w2.shape), resident(b2.shape),
            ],
            # narrow output: last block dim == full array dim (n_act)
            out_specs=pl.BlockSpec((tb, n_act), lambda i: (i, 0)),
        ),
        compiler_params=pltpu.CompilerParams(
            dimension_semantics=("parallel",)),  # both TCs on v7x when grid>=2
        cost_estimate=pl.CostEstimate(
            flops=flops,
            transcendentals=B * n_act,
            bytes_accessed=bytes_accessed),
    )(state, w0, b0, w1, b1, w2, b2)

    return out


def xavier_uniform(key, in_dim, out_dim):
    # torch.nn.init.xavier_uniform_ with gain=1:
    # limit = sqrt(6 / (fan_in + fan_out)), U(-limit, limit)
    limit = jnp.sqrt(6.0 / (in_dim + out_dim))
    return jax.random.uniform(
        key, (in_dim, out_dim), dtype=jnp.float32, minval=-limit, maxval=limit
    )


def init_params(key, num_inputs, num_actions, hidden_dims):
    k0, k1, k2 = jax.random.split(key, 3)
    h0, h1 = hidden_dims
    return {
        "w0": xavier_uniform(k0, num_inputs, h0),
        "b0": jnp.zeros((1, h0), jnp.float32),
        "w1": xavier_uniform(k1, h0, h1),
        "b1": jnp.zeros((1, h1), jnp.float32),
        "w2": xavier_uniform(k2, h1, num_actions),
        "b2": jnp.zeros((1, num_actions), jnp.float32),
    }


def reference_forward(state, params):
    h = jnp.maximum(state @ params["w0"] + params["b0"], 0.0)
    h = jnp.maximum(h @ params["w1"] + params["b1"], 0.0)
    y = h @ params["w2"] + params["b2"]
    return jnp.tanh(y) * ACTION_SCALE + ACTION_BIAS


if __name__ == "__main__":
    key = jax.random.PRNGKey(0)
    k_state, k_params = jax.random.split(key)

    batch = 4
    num_inputs = 16
    num_actions = 8
    hidden_dims = (32, 32)

    state = jax.random.normal(k_state, (batch, num_inputs), dtype=jnp.float32)
    params = init_params(k_params, num_inputs, num_actions, hidden_dims)
    prepped = prepare_params(params)   # one-time pad + bf16 cast (outside jit)

    out = jax.block_until_ready(deterministic_policy_forward(state, prepped))
    ref = reference_forward(state, params)
    assert out.shape == (batch, num_actions)
    # bf16 weights -> relaxed tolerance (outputs are tanh-bounded).
    assert jnp.allclose(out, ref, atol=2e-2, rtol=2e-2)

    # Also exercise the multi-step grid + masked partial last block.
    big_state = jax.random.normal(k_state, (515, num_inputs), dtype=jnp.float32)
    big_out = jax.block_until_ready(
        deterministic_policy_forward(big_state, prepped))
    big_ref = reference_forward(big_state, params)
    assert big_out.shape == (515, num_actions)
    assert jnp.allclose(big_out, big_ref, atol=2e-2, rtol=2e-2)

    print("KERNEL_OK")
</pallas_src>

<mosaic_0001>
module attributes {stable_mosaic.version = 11 : i64} {
  func.func @policy_kernel(%arg0: i32, %arg1: memref<8x16xf32, #tpu.memory_space<vmem>>, %arg2: memref<16x128xbf16, #tpu.memory_space<vmem>>, %arg3: memref<1x128xf32, #tpu.memory_space<vmem>>, %arg4: memref<128x128xbf16, #tpu.memory_space<vmem>>, %arg5: memref<1x128xf32, #tpu.memory_space<vmem>>, %arg6: memref<128x8xbf16, #tpu.memory_space<vmem>>, %arg7: memref<1x8xf32, #tpu.memory_space<vmem>>, %arg8: memref<8x8xf32, #tpu.memory_space<vmem>>) attributes {dimension_semantics = [#tpu.dimension_semantics<parallel>], iteration_bounds = array<i64: 1>, scalar_prefetch = 0 : i64, scratch_operands = 0 : i64, tpu.core_type = #tpu.core_type<tc>, window_params = [{transform_indices = @transform_0, window_bounds = array<i64: 8, 16>}, {pipeline_mode = #tpu.pipeline_mode<synchronous>, transform_indices = @transform_1, window_bounds = array<i64: 16, 128>}, {pipeline_mode = #tpu.pipeline_mode<synchronous>, transform_indices = @transform_2, window_bounds = array<i64: 1, 128>}, {pipeline_mode = #tpu.pipeline_mode<synchronous>, transform_indices = @transform_3, window_bounds = array<i64: 128, 128>}, {pipeline_mode = #tpu.pipeline_mode<synchronous>, transform_indices = @transform_4, window_bounds = array<i64: 1, 128>}, {pipeline_mode = #tpu.pipeline_mode<synchronous>, transform_indices = @transform_5, window_bounds = array<i64: 128, 8>}, {pipeline_mode = #tpu.pipeline_mode<synchronous>, transform_indices = @transform_6, window_bounds = array<i64: 1, 8>}, {transform_indices = @transform_7, window_bounds = array<i64: 8, 8>}]} {
    %c0 = arith.constant 0 : index
    %c0_0 = arith.constant 0 : index
    %0 = vector.load %arg1[%c0, %c0_0] : memref<8x16xf32, #tpu.memory_space<vmem>>, vector<8x16xf32>
    %1 = arith.truncf %0 : vector<8x16xf32> to vector<8x16xbf16>
    %c0_1 = arith.constant 0 : index
    %c0_2 = arith.constant 0 : index
    %2 = vector.load %arg2[%c0_1, %c0_2] : memref<16x128xbf16, #tpu.memory_space<vmem>>, vector<16x128xbf16>
    %cst = arith.constant dense<0.000000e+00> : vector<8x128xf32>
    %3 = tpu.matmul %1, %2, %cst {dimension_numbers = #tpu.dot_dimension_numbers<[1], [0], [0], [1], [0, 0, 1, 1], [], []>} : vector<8x16xbf16>, vector<16x128xbf16>, vector<8x128xf32> -> vector<8x128xf32>
    %c0_3 = arith.constant 0 : index
    %c0_4 = arith.constant 0 : index
    %4 = vector.load %arg3[%c0_3, %c0_4] : memref<1x128xf32, #tpu.memory_space<vmem>>, vector<1x128xf32>
    %5 = vector.broadcast %4 : vector<1x128xf32> to vector<8x128xf32>
    %6 = arith.addf %3, %5 : vector<8x128xf32>
    %cst_5 = arith.constant 0.000000e+00 : f32
    %7 = vector.broadcast %cst_5 : f32 to vector<8x128xf32>
    %8 = arith.maximumf %6, %7 : vector<8x128xf32>
    %9 = arith.truncf %8 : vector<8x128xf32> to vector<8x128xbf16>
    %c0_6 = arith.constant 0 : index
    %c0_7 = arith.constant 0 : index
    %10 = vector.load %arg4[%c0_6, %c0_7] : memref<128x128xbf16, #tpu.memory_space<vmem>>, vector<128x128xbf16>
    %cst_8 = arith.constant dense<0.000000e+00> : vector<8x128xf32>
    %11 = tpu.matmul %9, %10, %cst_8 {dimension_numbers = #tpu.dot_dimension_numbers<[1], [0], [0], [1], [0, 0, 1, 1], [], []>} : vector<8x128xbf16>, vector<128x128xbf16>, vector<8x128xf32> -> vector<8x128xf32>
    %c0_9 = arith.constant 0 : index
    %c0_10 = arith.constant 0 : index
    %12 = vector.load %arg5[%c0_9, %c0_10] : memref<1x128xf32, #tpu.memory_space<vmem>>, vector<1x128xf32>
    %13 = vector.broadcast %12 : vector<1x128xf32> to vector<8x128xf32>
    %14 = arith.addf %11, %13 : vector<8x128xf32>
    %cst_11 = arith.constant 0.000000e+00 : f32
    %15 = vector.broadcast %cst_11 : f32 to vector<8x128xf32>
    %16 = arith.maximumf %14, %15 : vector<8x128xf32>
    %17 = arith.truncf %16 : vector<8x128xf32> to vector<8x128xbf16>
    %c0_12 = arith.constant 0 : index
    %c0_13 = arith.constant 0 : index
    %18 = vector.load %arg6[%c0_12, %c0_13] : memref<128x8xbf16, #tpu.memory_space<vmem>>, vector<128x8xbf16>
    %cst_14 = arith.constant dense<0.000000e+00> : vector<8x8xf32>
    %19 = tpu.matmul %17, %18, %cst_14 {dimension_numbers = #tpu.dot_dimension_numbers<[1], [0], [0], [1], [0, 0, 1, 1], [], []>} : vector<8x128xbf16>, vector<128x8xbf16>, vector<8x8xf32> -> vector<8x8xf32>
    %c0_15 = arith.constant 0 : index
    %c0_16 = arith.constant 0 : index
    %20 = vector.load %arg7[%c0_15, %c0_16] : memref<1x8xf32, #tpu.memory_space<vmem>>, vector<1x8xf32>
    %21 = vector.broadcast %20 : vector<1x8xf32> to vector<8x8xf32>
    %22 = arith.addf %19, %21 : vector<8x8xf32>
    %23 = math.tanh %22 : vector<8x8xf32>
    %c0_17 = arith.constant 0 : index
    %c0_18 = arith.constant 0 : index
    %24 = vector.load %arg8[%c0_17, %c0_18] : memref<8x8xf32, #tpu.memory_space<vmem>>, vector<8x8xf32>
    tpu.vector_store %arg8[%c0_17, %c0_18], %23 {strides = array<i32>} : memref<8x8xf32, #tpu.memory_space<vmem>>, vector<8x8xf32>,
    return
  }
  func.func @transform_0(%arg0: i32) -> (i32, i32) {
    %c0_i32 = arith.constant 0 : i32
    %c0_i32_0 = arith.constant 0 : i32
    return %arg0, %c0_i32 : i32, i32
  }
  func.func @transform_1(%arg0: i32) -> (i32, i32) {
    %c0_i32 = arith.constant 0 : i32
    %c0_i32_0 = arith.constant 0 : i32
    %c0_i32_1 = arith.constant 0 : i32
    return %c0_i32, %c0_i32_0 : i32, i32
  }
  func.func @transform_2(%arg0: i32) -> (i32, i32) {
    %c0_i32 = arith.constant 0 : i32
    %c0_i32_0 = arith.constant 0 : i32
    %c0_i32_1 = arith.constant 0 : i32
    return %c0_i32, %c0_i32_0 : i32, i32
  }
  func.func @transform_3(%arg0: i32) -> (i32, i32) {
    %c0_i32 = arith.constant 0 : i32
    %c0_i32_0 = arith.constant 0 : i32
    %c0_i32_1 = arith.constant 0 : i32
    return %c0_i32, %c0_i32_0 : i32, i32
  }
  func.func @transform_4(%arg0: i32) -> (i32, i32) {
    %c0_i32 = arith.constant 0 : i32
    %c0_i32_0 = arith.constant 0 : i32
    %c0_i32_1 = arith.constant 0 : i32
    return %c0_i32, %c0_i32_0 : i32, i32
  }
  func.func @transform_5(%arg0: i32) -> (i32, i32) {
    %c0_i32 = arith.constant 0 : i32
    %c0_i32_0 = arith.constant 0 : i32
    %c0_i32_1 = arith.constant 0 : i32
    return %c0_i32, %c0_i32_0 : i32, i32
  }
  func.func @transform_6(%arg0: i32) -> (i32, i32) {
    %c0_i32 = arith.constant 0 : i32
    %c0_i32_0 = arith.constant 0 : i32
    %c0_i32_1 = arith.constant 0 : i32
    return %c0_i32, %c0_i32_0 : i32, i32
  }
  func.func @transform_7(%arg0: i32) -> (i32, i32) {
    %c0_i32 = arith.constant 0 : i32
    %c0_i32_0 = arith.constant 0 : i32
    return %arg0, %c0_i32 : i32, i32
  }
}

</mosaic_0001>

<llo_original>
// kernel: deterministic_policy_forward.1
$region0: #{deterministic_policy_forward.1}
  #allocation0 [shape = 'u32[]', space=smem, size = 0x4, offset = 0x4, fixed_abs, tag = 'smem constant byte address 0x4 - core index']
  #allocation1 [shape = 'u32[144,128]{1,0:T(1,128)}', space=vmem, size = 0x12000, scoped, tag = 'internal scratch']
  %s0 = inlined_call_operand.vmem [shape: f32[4,16], index: 0, kind: input, shape index: {}]
  %s1 = inlined_call_operand.vmem [shape: bf16[16,128], index: 1, kind: input, shape index: {}]
  %s2 = inlined_call_operand.vmem [shape: f32[1,128], index: 2, kind: input, shape index: {}]
  %s3 = inlined_call_operand.vmem [shape: bf16[128,128], index: 3, kind: input, shape index: {}]
  %s4 = inlined_call_operand.vmem [shape: f32[1,128], index: 4, kind: input, shape index: {}]
  %s5 = inlined_call_operand.vmem [shape: bf16[128,8], index: 5, kind: input, shape index: {}]
  %s6 = inlined_call_operand.vmem [shape: f32[1,8], index: 6, kind: input, shape index: {}]
  %s7 = inlined_call_operand.hbm [shape: f32[4,8], index: 7, kind: output, shape index: {}]
  %s8 = sld [smem:[#allocation0]]
  $region38: #{deterministic_policy_forward.1} parent=0
    _
  %s10 = ssub.s32 1, %s8
  %s11 = scalar_select 0, %s10, %s8
  $region1: #{deterministic_policy_forward.1} parent=0
    #allocation2 [shape = 'u8[4096]{0}', space=vmem, size = 0x1000, scoped, tag = 'output window, operand 0, single buffered']
    #allocation3 [shape = 's32[1]{0}', space=sflag, size = 0x4, scoped, tag = 'scoped memory for deterministic_policy_forward.1']
    %12 = vsyncpa [#allocation3], 0
    // Predicated region
    $region2: #{deterministic_policy_forward.1} parent=1 // pred_check
      _
    $region3: #{deterministic_policy_forward.1} parent=1 // pred_check_branch
      %14 = sbr.rel (0) target = $region5
    $region4: #{deterministic_policy_forward.1} parent=1 // pred_region
      _
    $region5: #{deterministic_policy_forward.1} parent=1 // pred_fallthru
      _
    // Predicated region
    $region6: #{deterministic_policy_forward.1} parent=1 // pred_check
      _
    $region7: #{deterministic_policy_forward.1} parent=1 // pred_check_branch
      %16 = sbr.rel (0) target = $region9
    $region8: #{deterministic_policy_forward.1} parent=1 // pred_region
      _
    $region9: #{deterministic_policy_forward.1} parent=1 // pred_fallthru
      _
    // Predicated region
    $region10: #{deterministic_policy_forward.1} parent=1 // pred_check
      _
    $region11: #{deterministic_policy_forward.1} parent=1 // pred_check_branch
      %18 = sbr.rel (0) target = $region13
    $region12: #{deterministic_policy_forward.1} parent=1 // pred_region
      _
    $region13: #{deterministic_policy_forward.1} parent=1 // pred_fallthru
      _
    // Predicated region
    $region14: #{deterministic_policy_forward.1} parent=1 // pred_check
      _
    $region15: #{deterministic_policy_forward.1} parent=1 // pred_check_branch
      %20 = sbr.rel (0) target = $region17
    $region16: #{deterministic_policy_forward.1} parent=1 // pred_region
      _
    $region17: #{deterministic_policy_forward.1} parent=1 // pred_fallthru
      _
    // Predicated region
    $region18: #{deterministic_policy_forward.1} parent=1 // pred_check
      _
    $region19: #{deterministic_policy_forward.1} parent=1 // pred_check_branch
      %22 = sbr.rel (0) target = $region21
    $region20: #{deterministic_policy_forward.1} parent=1 // pred_region
      _
    $region21: #{deterministic_policy_forward.1} parent=1 // pred_fallthru
      _
    // Predicated region
    $region22: #{deterministic_policy_forward.1} parent=1 // pred_check
      _
    $region23: #{deterministic_policy_forward.1} parent=1 // pred_check_branch
      %24 = sbr.rel (0) target = $region25
    $region24: #{deterministic_policy_forward.1} parent=1 // pred_region
      _
    $region25: #{deterministic_policy_forward.1} parent=1 // pred_fallthru
      _
    // Predicated region
    $region26: #{deterministic_policy_forward.1} parent=1 // pred_check
      _
    $region27: #{deterministic_policy_forward.1} parent=1 // pred_check_branch
      %26 = sbr.rel (0) target = $region29
    $region28: #{deterministic_policy_forward.1} parent=1 // pred_region
      _
    $region29: #{deterministic_policy_forward.1} parent=1 // pred_fallthru
      _
    %v28 = vld [vmem:[%s0] sm:$0xff]
    %v29 = vpack.c.bf16 %v28, %v28
    %v30 = vld [vmem:[%s1] sm:$0xf]
    %v31 = vld [vmem:[%s1 + $0x4] sm:$0xf]
    %v32 = vld [vmem:[%s2] sm:$0x1]
    %v34 = vlaneseq
    %v35 = vshrl.u32 %v34, 7
    %v36 = vsub.s32 0, %v35
    %v37 = vrot.slane %v32, %v36
    %v41 = vunpack.c.l.b16 %v30
    %v42 = vunpack.c.l.b16 %v31
    %v43 = vpack.c.b16 %v42, %v41
    %vm45 = vcmask 130048
    %v47 = vsel %vm45, %v29, 0
    %49 = vmatprep.subr.bf16.mxu0 0
    %50 = vmatpush1.bf16.msra.mxu0 %v43
    %51 = vmatprep.subr.bf16.mxu0 0
    %52 = vmatpush1.bf16.msra.mxu0 0
    %53 = vmatprep.subr.bf16.mxu0 0
    %54 = vmatpush1.bf16.msra.mxu0 0
    %55 = vmatprep.subr.bf16.mxu0 0
    %56 = vmatpush1.bf16.msra.mxu0 0
    %57 = vmatprep.subr.bf16.mxu0 0
    %58 = vmatpush1.bf16.msra.mxu0 0
    %59 = vmatprep.subr.bf16.mxu0 0
    %60 = vmatpush1.bf16.msra.mxu0 0
    %61 = vmatprep.subr.bf16.mxu0 0
    %62 = vmatpush1.bf16.msra.mxu0 0
    %63 = vmatprep.subr.bf16.mxu0 0
    %64 = vmatpush1.bf16.msra.mxu0 0
    %65 = vmatprep.subr.bf16.mxu0 0
    %66 = vmatpush1.bf16.msra.mxu0 0
    %67 = vmatprep.subr.bf16.mxu0 0
    %68 = vmatpush1.bf16.msra.mxu0 0
    %69 = vmatprep.subr.bf16.mxu0 0
    %70 = vmatpush1.bf16.msra.mxu0 0
    %71 = vmatprep.subr.bf16.mxu0 0
    %72 = vmatpush1.bf16.msra.mxu0 0
    %73 = vmatprep.subr.bf16.mxu0 0
    %74 = vmatpush1.bf16.msra.mxu0 0
    %75 = vmatprep.subr.bf16.mxu0 0
    %76 = vmatpush1.bf16.msra.mxu0 0
    %77 = vmatprep.subr.bf16.mxu0 0
    %78 = vmatpush1.bf16.msra.mxu0 0
    %79 = vmatprep.subr.bf16.mxu0 0
    %80 = vmatpush1.bf16.msra.mxu0 0
    %81 = vmatprep.mubr.bf16.mxu0 0
    %82 = vmatmul.mubr.bf16.gmra.mrb[0].mxu0 %v47
    %v83 = vpop.f32.mrb[0].mxu0
    %v84 = vadd.f32 %v37, %v83
    %v85 = vpop.f32.mrb[0].mxu0
    %v86 = vpop.f32.mrb[0].mxu0
    %v87 = vpop.f32.mrb[0].mxu0
    %88 = vdwg.mxu0
    %v89 = vmax.f32 %v84, 0.0
    %v90 = vpack.c.bf16 %v89, %v89
    %v91 = vld [vmem:[%s3] sm:$0xf]
    %v92 = vld [vmem:[%s3 + $0x4] sm:$0xf]
    %v93 = vld [vmem:[%s3 + $0x8] sm:$0xf]
    %v94 = vld [vmem:[%s3 + $0xc] sm:$0xf]
    %v95 = vld [vmem:[%s3 + $0x10] sm:$0xf]
    %v96 = vld [vmem:[%s3 + $0x14] sm:$0xf]
    %v97 = vld [vmem:[%s3 + $0x18] sm:$0xf]
    %v98 = vld [vmem:[%s3 + $0x1c] sm:$0xf]
    %v99 = vld [vmem:[%s3 + $0x20] sm:$0xf]
    %v100 = vld [vmem:[%s3 + $0x24] sm:$0xf]
    %v101 = vld [vmem:[%s3 + $0x28] sm:$0xf]
    %v102 = vld [vmem:[%s3 + $0x2c] sm:$0xf]
    %v103 = vld [vmem:[%s3 + $0x30] sm:$0xf]
    %v104 = vld [vmem:[%s3 + $0x34] sm:$0xf]
    %v105 = vld [vmem:[%s3 + $0x38] sm:$0xf]
    %v106 = vld [vmem:[%s3 + $0x3c] sm:$0xf]
    %v107 = vld [vmem:[%s4] sm:$0x1]
    %v109 = vlaneseq
    %v110 = vshrl.u32 %v109, 7
    %v111 = vsub.s32 0, %v110
    %v112 = vrot.slane %v107, %v111
    %v130 = vunpack.c.l.b16 %v91
    %v131 = vunpack.c.l.b16 %v92
    %v132 = vunpack.c.l.b16 %v93
    %v133 = vunpack.c.l.b16 %v94
    %v134 = vunpack.c.l.b16 %v95
    %v135 = vunpack.c.l.b16 %v96
    %v136 = vunpack.c.l.b16 %v97
    %v137 = vunpack.c.l.b16 %v98
    %v138 = vunpack.c.l.b16 %v99
    %v139 = vunpack.c.l.b16 %v100
    %v140 = vunpack.c.l.b16 %v101
    %v141 = vunpack.c.l.b16 %v102
    %v142 = vunpack.c.l.b16 %v103
    %v143 = vunpack.c.l.b16 %v104
    %v144 = vunpack.c.l.b16 %v105
    %v145 = vunpack.c.l.b16 %v106
    %v146 = vpack.c.b16 %v131, %v130
    %v147 = vpack.c.b16 %v133, %v132
    %v148 = vpack.c.b16 %v135, %v134
    %v149 = vpack.c.b16 %v137, %v136
    %v150 = vpack.c.b16 %v139, %v138
    %v151 = vpack.c.b16 %v141, %v140
    %v152 = vpack.c.b16 %v143, %v142
    %v153 = vpack.c.b16 %v145, %v144
    %162 = vmatprep.subr.bf16.mxu0 0
    %163 = vmatpush1.bf16.msra.mxu0 %v146
    %164 = vmatprep.subr.bf16.mxu0 0
    %165 = vmatpush1.bf16.msra.mxu0 %v147
    %166 = vmatprep.subr.bf16.mxu0 0
    %167 = vmatpush1.bf16.msra.mxu0 %v148
    %168 = vmatprep.subr.bf16.mxu0 0
    %169 = vmatpush1.bf16.msra.mxu0 %v149
    %170 = vmatprep.subr.bf16.mxu0 0
    %171 = vmatpush1.bf16.msra.mxu0 %v150
    %172 = vmatprep.subr.bf16.mxu0 0
    %173 = vmatpush1.bf16.msra.mxu0 %v151
    %174 = vmatprep.subr.bf16.mxu0 0
    %175 = vmatpush1.bf16.msra.mxu0 %v152
    %176 = vmatprep.subr.bf16.mxu0 0
    %177 = vmatpush1.bf16.msra.mxu0 %v153
    %178 = vmatprep.subr.bf16.mxu0 0
    %179 = vmatpush1.bf16.msra.mxu0 0
    %180 = vmatprep.subr.bf16.mxu0 0
    %181 = vmatpush1.bf16.msra.mxu0 0
    %182 = vmatprep.subr.bf16.mxu0 0
    %183 = vmatpush1.bf16.msra.mxu0 0
    %184 = vmatprep.subr.bf16.mxu0 0
    %185 = vmatpush1.bf16.msra.mxu0 0
    %186 = vmatprep.subr.bf16.mxu0 0
    %187 = vmatpush1.bf16.msra.mxu0 0
    %188 = vmatprep.subr.bf16.mxu0 0
    %189 = vmatpush1.bf16.msra.mxu0 0
    %190 = vmatprep.subr.bf16.mxu0 0
    %191 = vmatpush1.bf16.msra.mxu0 0
    %192 = vmatprep.subr.bf16.mxu0 0
    %193 = vmatpush1.bf16.msra.mxu0 0
    %194 = vmatprep.mubr.bf16.mxu0 0
    %195 = vmatmul.mubr.bf16.gmra.mrb[0].mxu0 %v90
    %v196 = vpop.f32.mrb[0].mxu0
    %v197 = vadd.f32 %v112, %v196
    %v198 = vpop.f32.mrb[0].mxu0
    %v199 = vpop.f32.mrb[0].mxu0
    %v200 = vpop.f32.mrb[0].mxu0
    %201 = vdwg.mxu0
    %v202 = vmax.f32 %v197, 0.0
    %v203 = vpack.c.bf16 %v202, %v202
    %v204 = vld [vmem:[%s5] sm:$0xf]
    %v205 = vld [vmem:[%s5 + $0x4] sm:$0xf]
    %v206 = vld [vmem:[%s5 + $0x8] sm:$0xf]
    %v207 = vld [vmem:[%s5 + $0xc] sm:$0xf]
    %v208 = vld [vmem:[%s5 + $0x10] sm:$0xf]
    %v209 = vld [vmem:[%s5 + $0x14] sm:$0xf]
    %v210 = vld [vmem:[%s5 + $0x18] sm:$0xf]
    %v211 = vld [vmem:[%s5 + $0x1c] sm:$0xf]
    %v212 = vld [vmem:[%s5 + $0x20] sm:$0xf]
    %v213 = vld [vmem:[%s5 + $0x24] sm:$0xf]
    %v214 = vld [vmem:[%s5 + $0x28] sm:$0xf]
    %v215 = vld [vmem:[%s5 + $0x2c] sm:$0xf]
    %v216 = vld [vmem:[%s5 + $0x30] sm:$0xf]
    %v217 = vld [vmem:[%s5 + $0x34] sm:$0xf]
    %v218 = vld [vmem:[%s5 + $0x38] sm:$0xf]
    %v219 = vld [vmem:[%s5 + $0x3c] sm:$0xf]
    %v220 = vld [vmem:[%s6] sm:$0x1]
    %v222 = vlaneseq
    %v223 = vshrl.u32 %v222, 7
    %v224 = vsub.s32 0, %v223
    %v225 = vrot.slane %v220, %v224
    %v243 = vunpack.c.l.b16 %v204
    %v244 = vunpack.c.l.b16 %v205
    %v245 = vunpack.c.l.b16 %v206
    %v246 = vunpack.c.l.b16 %v207
    %v247 = vunpack.c.l.b16 %v208
    %v248 = vunpack.c.l.b16 %v209
    %v249 = vunpack.c.l.b16 %v210
    %v250 = vunpack.c.l.b16 %v211
    %v251 = vunpack.c.l.b16 %v212
    %v252 = vunpack.c.l.b16 %v213
    %v253 = vunpack.c.l.b16 %v214
    %v254 = vunpack.c.l.b16 %v215
    %v255 = vunpack.c.l.b16 %v216
    %v256 = vunpack.c.l.b16 %v217
    %v257 = vunpack.c.l.b16 %v218
    %v258 = vunpack.c.l.b16 %v219
    %v259 = vpack.c.b16 %v244, %v243
    %v260 = vpack.c.b16 %v246, %v245
    %v261 = vpack.c.b16 %v248, %v247
    %v262 = vpack.c.b16 %v250, %v249
    %v263 = vpack.c.b16 %v252, %v251
    %v264 = vpack.c.b16 %v254, %v253
    %v265 = vpack.c.b16 %v256, %v255
    %v266 = vpack.c.b16 %v258, %v257
    %275 = vmatprep.subr.bf16.mxu0 0
    %276 = vmatpush1.bf16.msra.mxu0 %v259
    %277 = vmatprep.subr.bf16.mxu0 0
    %278 = vmatpush1.bf16.msra.mxu0 %v260
    %279 = vmatprep.subr.bf16.mxu0 0
    %280 = vmatpush1.bf16.msra.mxu0 %v261
    %281 = vmatprep.subr.bf16.mxu0 0
    %282 = vmatpush1.bf16.msra.mxu0 %v262
    %283 = vmatprep.subr.bf16.mxu0 0
    %284 = vmatpush1.bf16.msra.mxu0 %v263
    %285 = vmatprep.subr.bf16.mxu0 0
    %286 = vmatpush1.bf16.msra.mxu0 %v264
    %287 = vmatprep.subr.bf16.mxu0 0
    %288 = vmatpush1.bf16.msra.mxu0 %v265
    %289 = vmatprep.subr.bf16.mxu0 0
    %290 = vmatpush1.bf16.msra.mxu0 %v266
    %291 = vmatprep.subr.bf16.mxu0 0
    %292 = vmatpush1.bf16.msra.mxu0 0
    %293 = vmatprep.subr.bf16.mxu0 0
    %294 = vmatpush1.bf16.msra.mxu0 0
    %295 = vmatprep.subr.bf16.mxu0 0
    %296 = vmatpush1.bf16.msra.mxu0 0
    %297 = vmatprep.subr.bf16.mxu0 0
    %298 = vmatpush1.bf16.msra.mxu0 0
    %299 = vmatprep.subr.bf16.mxu0 0
    %300 = vmatpush1.bf16.msra.mxu0 0
    %301 = vmatprep.subr.bf16.mxu0 0
    %302 = vmatpush1.bf16.msra.mxu0 0
    %303 = vmatprep.subr.bf16.mxu0 0
    %304 = vmatpush1.bf16.msra.mxu0 0
    %305 = vmatprep.subr.bf16.mxu0 0
    %306 = vmatpush1.bf16.msra.mxu0 0
    %307 = vmatprep.mubr.bf16.mxu0 0
    %308 = vmatmul.mubr.bf16.gmra.mrb[0].mxu0 %v203
    %v309 = vpop.f32.mrb[0].mxu0
    %v310 = vadd.f32 %v225, %v309
    %v311 = vpop.f32.mrb[0].mxu0
    %v312 = vpop.f32.mrb[0].mxu0
    %v313 = vpop.f32.mrb[0].mxu0
    %314 = vdwg.mxu0
    %v315 = vtanh.pop %v310
    %vm316 = vcmask 64512
    %317 = vst.msk [vmem:[#allocation2] sm:$0xff] %vm316, %v315
    // Predicated region
    $region30: #{deterministic_policy_forward.1} parent=1 // pred_check
      _
    $region31: #{deterministic_policy_forward.1} parent=1 // pred_check_branch
      %319 = sbr.rel (0) target = $region33
    $region32: #{deterministic_policy_forward.1} parent=1 // pred_region
      %s321 = ssub.s32 128, 64
      %322 = vsyncadd [#allocation3], %s321
      %s323 = sshll.u32 [#allocation2], 4
      %s324 = int_to_ptr.vmem [resolvable:$true] %s323
      %329 = dma.vmem_to_hbm [thread:$0]  %s324, 64, %s7, [#allocation3], 64, 64, 4
    $region33: #{deterministic_policy_forward.1} parent=1 // pred_fallthru
      _
    // Predicated region
    $region34: #{deterministic_policy_forward.1} parent=1 // pred_check
      _
    $region35: #{deterministic_policy_forward.1} parent=1 // pred_check_branch
      %331 = sbr.rel (0) target = $region37
    $region36: #{deterministic_policy_forward.1} parent=1 // pred_region
      %332 = dma.done [#allocation3], 128
    $region37: #{deterministic_policy_forward.1} parent=1 // pred_fallthru
      _
    %333 = vsyncpa [#allocation3], 1

</llo_original>
